<compile_context>
chip_gen: v5e
topology: v5e:2x2
jax: 0.10.0
libtpu: 0.0.40
codegen_flags: <defaults>
</compile_context>

<pallas_src>
import functools

import jax
import jax.numpy as jnp
from jax.experimental import pallas as pl
from jax.experimental.pallas import tpu as pltpu


_MASK_VALUE = -1e30   # finite "-inf": exp underflows to 0, no NaN from inf-inf
_COS_EPS = 1e-8       # torch.nn.CosineSimilarity eps (clamped per-vector norm)


def _round_up(x, m):
    return (x + m - 1) // m * m


# ---------------------------------------------------------------------------
# Prepass: L2-normalize rows of z once, so the tiled kernel never redoes it.
# ---------------------------------------------------------------------------
def _normalize_kernel(z_ref, zn_ref):
    z = z_ref[...].astype(jnp.float32)                         # (T, D_pad)
    ssq = jnp.sum(z * z, axis=-1, keepdims=True)               # (T, 1)
    inv_norm = jax.lax.rsqrt(jnp.maximum(ssq, _COS_EPS * _COS_EPS))
    zn_ref[...] = (z * inv_norm).astype(zn_ref.dtype)


# ---------------------------------------------------------------------------
# Main kernel: one (T x T) block of sim = zn @ zn.T / temp, folded into an
# online logsumexp over the column-tile (reduction) grid axis.
# ---------------------------------------------------------------------------
def _nt_xent_kernel(zq_ref, zk_ref, out_ref, m_sc, l_sc, p_sc, *,
                    n_valid, batch, inv_temp, tq, tk):
    q = pl.program_id(0)
    k = pl.program_id(1)
    nk = pl.num_programs(1)

    @pl.when(k == 0)
    def _init():
        m_sc[...] = jnp.full(m_sc.shape, _MASK_VALUE, m_sc.dtype)
        l_sc[...] = jnp.zeros(l_sc.shape, l_sc.dtype)
        p_sc[...] = jnp.zeros(p_sc.shape, p_sc.dtype)

    # (tq, tk) similarity tile: contraction over the feature dim without an
    # explicit transpose; f32 accumulation even for bf16 operands.
    s = jax.lax.dot_general(
        zq_ref[...], zk_ref[...],
        dimension_numbers=(((1,), (1,)), ((), ())),
        preferred_element_type=jnp.float32,
    ) * inv_temp

    # Tile-local masks from 2-D iota + scalar tile offsets (no NxN iotas).
    row = q * tq + jax.lax.broadcasted_iota(jnp.int32, (tq, tk), 0)
    col = k * tk + jax.lax.broadcasted_iota(jnp.int32, (tq, tk), 1)

    # Positive-pair column: i+B for i < B else i-B  (== (i+B) mod N).
    pos_col = jnp.where(row < batch, row + batch, row - batch)
    p_sc[...] += jnp.sum(jnp.where(col == pos_col, s, 0.0),
                         axis=-1, keepdims=True)

    # logsumexp runs over all j != i within the valid (unpadded) columns.
    keep = jnp.logical_and(col != row, col < n_valid)
    s_masked = jnp.where(keep, s, _MASK_VALUE)

    m_prev = m_sc[...]
    m_new = jnp.maximum(m_prev, jnp.max(s_masked, axis=-1, keepdims=True))
    alpha = jnp.exp(m_prev - m_new)
    l_sc[...] = alpha * l_sc[...] + jnp.sum(jnp.exp(s_masked - m_new),
                                            axis=-1, keepdims=True)
    m_sc[...] = m_new

    @pl.when(k == nk - 1)
    def _finalize():
        lse = jnp.log(l_sc[...]) + m_sc[...]                   # (tq, 1)
        row_id = q * tq + jax.lax.broadcasted_iota(jnp.int32, (tq, 1), 0)
        contrib = jnp.where(row_id < n_valid, lse - p_sc[...], 0.0)
        # Lane-dense (tq, 128) store -> unmasked vst instead of a (1,1) scalar.
        out_ref[...] = jnp.broadcast_to(contrib, (tq, 128))


def nt_xent_loss(z_i, z_j, temperature=1.0, *, tile=256,
                 mxu_dtype=jnp.bfloat16):
    """NT-Xent (SimCLR) loss.  z_i, z_j: (B, D).  Returns scalar f32 loss.

    mxu_dtype: dtype of the normalized embeddings fed to the MXU for the
      similarity matmul (bf16 is ~2-4x faster on v6e/v7x); the exp/log/LSE
      path is always float32.
    tile: row/column tile of the N x N similarity matrix (multiple of 128).
      Re-derive downwards on v7x (64 MiB VMEM) if D is very large.
    """
    assert z_i.shape == z_j.shape and z_i.ndim == 2
    assert tile % 128 == 0
    B, D = z_i.shape
    N = 2 * B
    inv_temp = 1.0 / float(temperature)

    # Tile / padding geometry: T multiple of 128 (lanes / MXU), D padded to a
    # lane multiple.  Padded rows/columns are zero vectors, masked in-kernel.
    T = min(tile, _round_up(N, 128))
    N_pad = _round_up(N, T)
    D_pad = _round_up(D, 128)

    # One cheap O(N*D) concat+pad pass (negligible vs the O(N^2*D) sim work).
    z = jnp.concatenate([z_i, z_j], axis=0)
    z = jnp.pad(z, ((0, N_pad - N), (0, D_pad - D)))

    # ---- prepass: normalized embeddings, computed exactly once ----
    zn = pl.pallas_call(
        _normalize_kernel,
        out_shape=jax.ShapeDtypeStruct((N_pad, D_pad), mxu_dtype),
        grid_spec=pltpu.PrefetchScalarGridSpec(
            num_scalar_prefetch=0,
            grid=(N_pad // T,),
            in_specs=[pl.BlockSpec((T, D_pad), lambda i: (i, 0))],
            out_specs=pl.BlockSpec((T, D_pad), lambda i: (i, 0)),
        ),
        compiler_params=pltpu.CompilerParams(
            dimension_semantics=("parallel",),
        ),
    )(z)

    # ---- main tiled kernel: online logsumexp over column tiles ----
    kernel = functools.partial(
        _nt_xent_kernel, n_valid=N, batch=B, inv_temp=inv_temp, tq=T, tk=T)
    partial_rows = pl.pallas_call(
        kernel,
        out_shape=jax.ShapeDtypeStruct((N_pad, 128), jnp.float32),
        grid_spec=pltpu.PrefetchScalarGridSpec(
            num_scalar_prefetch=0,
            grid=(N_pad // T, N_pad // T),
            in_specs=[
                pl.BlockSpec((T, D_pad), lambda q, k: (q, 0)),   # query rows
                pl.BlockSpec((T, D_pad), lambda q, k: (k, 0)),   # key rows
            ],
            out_specs=pl.BlockSpec((T, 128), lambda q, k: (q, 0)),
            scratch_shapes=[
                pltpu.VMEM((T, 1), jnp.float32),   # running max  m
                pltpu.VMEM((T, 1), jnp.float32),   # running sum  l
                pltpu.VMEM((T, 1), jnp.float32),   # positive logit
            ],
        ),
        compiler_params=pltpu.CompilerParams(
            # Row axis parallel (2 TCs on v7x); reduction axis last, arbitrary.
            dimension_semantics=("parallel", "arbitrary"),
            vmem_limit_bytes=32 * 1024 * 1024,
        ),
    )(zn, zn)

    # Padded rows contribute exactly 0; mean over the N real rows.
    return jnp.sum(partial_rows[:, 0]) / jnp.float32(N)


def _nt_xent_ref(z_i, z_j, temperature=1.0):
    """Pure-JAX reference mirroring the PyTorch module."""
    B = z_i.shape[0]
    N = 2 * B
    z = jnp.concatenate([z_i, z_j], axis=0).astype(jnp.float32)
    zn = z / jnp.maximum(jnp.linalg.norm(z, axis=-1, keepdims=True), 1e-8)
    sim = jnp.dot(zn, zn.T, precision=jax.lax.Precision.HIGHEST) / temperature
    idx = jnp.arange(N)
    pos = sim[idx, (idx + B) % N]
    masked = jnp.where(jnp.eye(N, dtype=bool), -jnp.inf, sim)
    lse = jax.scipy.special.logsumexp(masked, axis=-1)
    return jnp.sum(lse - pos) / N


if __name__ == "__main__":
    key = jax.random.PRNGKey(0)
    k1, k2, k3, k4 = jax.random.split(key, 4)
    temperature = 0.5

    # Small shapes consistent with the module: batch=4 -> N=8, hidden=32.
    B, D = 4, 32
    z_i = jax.random.normal(k1, (B, D), dtype=jnp.float32)
    z_j = jax.random.normal(k2, (B, D), dtype=jnp.float32)
    ref = _nt_xent_ref(z_i, z_j, temperature)

    # f32 MXU operands: tight check.
    out_f32 = jax.block_until_ready(
        nt_xent_loss(z_i, z_j, temperature, mxu_dtype=jnp.float32))
    assert jnp.allclose(out_f32, ref, rtol=1e-3, atol=1e-3), (out_f32, ref)

    # Default bf16 MXU operands (f32 softmax path): looser check.
    out_bf16 = jax.block_until_ready(nt_xent_loss(z_i, z_j, temperature))
    assert jnp.allclose(out_bf16, ref, rtol=5e-2, atol=5e-2), (out_bf16, ref)

    # Larger case exercising a multi-tile grid + row/column padding
    # (N = 320 -> N_pad = 512, grid (2, 2)).
    B2, D2 = 160, 96
    z_i2 = jax.random.normal(k3, (B2, D2), dtype=jnp.float32)
    z_j2 = jax.random.normal(k4, (B2, D2), dtype=jnp.float32)
    ref2 = _nt_xent_ref(z_i2, z_j2, temperature)
    out2 = jax.block_until_ready(
        nt_xent_loss(z_i2, z_j2, temperature, mxu_dtype=jnp.float32))
    assert jnp.allclose(out2, ref2, rtol=1e-3, atol=1e-3), (out2, ref2)

    print("KERNEL_OK")
</pallas_src>

<mosaic_0001>
module attributes {stable_mosaic.version = 11 : i64} {
  func.func @_normalize_kernel(%arg0: i32, %arg1: memref<128x128xf32, #tpu.memory_space<vmem>>, %arg2: memref<128x128xf32, #tpu.memory_space<vmem>>) attributes {dimension_semantics = [#tpu.dimension_semantics<parallel>], iteration_bounds = array<i64: 1>, scalar_prefetch = 0 : i64, scratch_operands = 0 : i64, tpu.core_type = #tpu.core_type<tc>, window_params = [{transform_indices = @transform_0, window_bounds = array<i64: 128, 128>}, {transform_indices = @transform_1, window_bounds = array<i64: 128, 128>}]} {
    %c0 = arith.constant 0 : index
    %c0_0 = arith.constant 0 : index
    %0 = vector.load %arg1[%c0, %c0_0] : memref<128x128xf32, #tpu.memory_space<vmem>>, vector<128x128xf32>
    %1 = arith.mulf %0, %0 : vector<128x128xf32>
    %cst = arith.constant dense<0.000000e+00> : vector<128xf32>
    %2 = vector.multi_reduction <add>, %1, %cst [1] : vector<128x128xf32> to vector<128xf32>
    %3 = vector.shape_cast %2 : vector<128xf32> to vector<128x1xf32>
    %cst_1 = arith.constant 1.000000e-16 : f32
    %4 = vector.broadcast %cst_1 : f32 to vector<128x1xf32>
    %5 = arith.maximumf %3, %4 : vector<128x1xf32>
    %6 = math.rsqrt %5 : vector<128x1xf32>
    %7 = vector.broadcast %6 : vector<128x1xf32> to vector<128x128xf32>
    %8 = arith.mulf %0, %7 : vector<128x128xf32>
    %c0_2 = arith.constant 0 : index
    %c0_3 = arith.constant 0 : index
    %9 = vector.load %arg2[%c0_2, %c0_3] : memref<128x128xf32, #tpu.memory_space<vmem>>, vector<128x128xf32>
    tpu.vector_store %arg2[%c0_2, %c0_3], %8 {strides = array<i32>} : memref<128x128xf32, #tpu.memory_space<vmem>>, vector<128x128xf32>,
    return
  }
  func.func @transform_0(%arg0: i32) -> (i32, i32) {
    %c0_i32 = arith.constant 0 : i32
    %c0_i32_0 = arith.constant 0 : i32
    return %arg0, %c0_i32 : i32, i32
  }
  func.func @transform_1(%arg0: i32) -> (i32, i32) {
    %c0_i32 = arith.constant 0 : i32
    %c0_i32_0 = arith.constant 0 : i32
    return %arg0, %c0_i32 : i32, i32
  }
}

</mosaic_0001>

<llo_original>
// kernel: tpu_custom_call.1
$region0: #{tpu_custom_call.1}
  #allocation0 [shape = 'u32[]', space=smem, size = 0x4, offset = 0x4, fixed_abs, tag = 'smem constant byte address 0x4 - core index']
  #allocation1 [shape = 'u32[72,128]{1,0:T(1,128)}', space=vmem, size = 0x9000, scoped, tag = 'internal scratch']
  %s0 = inlined_call_operand.hbm [shape: f32[128,128], index: 0, kind: input, shape index: {}]
  %s1 = inlined_call_operand.hbm [shape: f32[128,128], index: 1, kind: output, shape index: {}]
  %s2 = sld [smem:[#allocation0]]
  $region18: #{tpu_custom_call.1} parent=0
    _
  %s4 = ssub.s32 1, %s2
  %s5 = scalar_select 0, %s4, %s2
  $region1: #{tpu_custom_call.1} parent=0
    #allocation2 [shape = 'u8[65536]{0}', space=vmem, size = 0x10000, scoped, tag = 'input window, operand 0, single buffered']
    #allocation3 [shape = 's32[1]{0}', space=sflag, size = 0x4, scoped, tag = 'scoped memory for tpu_custom_call.1']
    #allocation4 [shape = 's32[1]{0}', space=sflag, size = 0x4, scoped, tag = 'scoped memory for tpu_custom_call.1']
    #allocation5 [shape = 'u8[65536]{0}', space=vmem, size = 0x10000, scoped, tag = 'output window, operand 0, single buffered']
    %6 = vsyncpa [#allocation3], 0
    %7 = vsyncpa [#allocation4], 0
    // Predicated region
    $region2: #{tpu_custom_call.1} parent=1 // pred_check
      _
    $region3: #{tpu_custom_call.1} parent=1 // pred_check_branch
      %9 = sbr.rel (0) target = $region5
    $region4: #{tpu_custom_call.1} parent=1 // pred_region
      %11 = vsyncadd [#allocation3], 0
      %s12 = sshll.u32 %s0, 4
      %s13 = int_to_ptr.hbm [resolvable:$true] %s12
      %s14 = sshll.u32 [#allocation2], 4
      %s15 = int_to_ptr.vmem [resolvable:$true] %s14
      %20 = dma.hbm_to_vmem [thread:$0]  %s13, 2048, %s15, [#allocation3], 128, 128, 8
    $region5: #{tpu_custom_call.1} parent=1 // pred_fallthru
      _
    // Predicated region
    $region6: #{tpu_custom_call.1} parent=1 // pred_check
      _
    $region7: #{tpu_custom_call.1} parent=1 // pred_check_branch
      %22 = sbr.rel (0) target = $region9
    $region8: #{tpu_custom_call.1} parent=1 // pred_region
      %24 = dma.done [#allocation3], 2048
    $region9: #{tpu_custom_call.1} parent=1 // pred_fallthru
      _
    %v25 = vld [vmem:[#allocation2] sm:$0xff]
    %v26 = vld [vmem:[#allocation2 + $0x8] sm:$0xff]
    %v27 = vld [vmem:[#allocation2 + $0x10] sm:$0xff]
    %v28 = vld [vmem:[#allocation2 + $0x18] sm:$0xff]
    %v29 = vld [vmem:[#allocation2 + $0x20] sm:$0xff]
    %v30 = vld [vmem:[#allocation2 + $0x28] sm:$0xff]
    %v31 = vld [vmem:[#allocation2 + $0x30] sm:$0xff]
    %v32 = vld [vmem:[#allocation2 + $0x38] sm:$0xff]
    %v33 = vld [vmem:[#allocation2 + $0x40] sm:$0xff]
    %v34 = vld [vmem:[#allocation2 + $0x48] sm:$0xff]
    %v35 = vld [vmem:[#allocation2 + $0x50] sm:$0xff]
    %v36 = vld [vmem:[#allocation2 + $0x58] sm:$0xff]
    %v37 = vld [vmem:[#allocation2 + $0x60] sm:$0xff]
    %v38 = vld [vmem:[#allocation2 + $0x68] sm:$0xff]
    %v39 = vld [vmem:[#allocation2 + $0x70] sm:$0xff]
    %v40 = vld [vmem:[#allocation2 + $0x78] sm:$0xff]
    %v41 = vmul.f32 %v25, %v25
    %v42 = vmul.f32 %v26, %v26
    %v43 = vmul.f32 %v27, %v27
    %v44 = vmul.f32 %v28, %v28
    %v45 = vmul.f32 %v29, %v29
    %v46 = vmul.f32 %v30, %v30
    %v47 = vmul.f32 %v31, %v31
    %v48 = vmul.f32 %v32, %v32
    %v49 = vmul.f32 %v33, %v33
    %v50 = vmul.f32 %v34, %v34
    %v51 = vmul.f32 %v35, %v35
    %v52 = vmul.f32 %v36, %v36
    %v53 = vmul.f32 %v37, %v37
    %v54 = vmul.f32 %v38, %v38
    %v55 = vmul.f32 %v39, %v39
    %v56 = vmul.f32 %v40, %v40
    %57 = vadd.xlane.f32.xlu0 %v41
    %v58 = vpop.xlane.xlu0 %57
    %59 = vadd.xlane.f32.xlu0 %v42
    %v60 = vpop.xlane.xlu0 %59
    %61 = vadd.xlane.f32.xlu0 %v43
    %v62 = vpop.xlane.xlu0 %61
    %63 = vadd.xlane.f32.xlu0 %v44
    %v64 = vpop.xlane.xlu0 %63
    %65 = vadd.xlane.f32.xlu0 %v45
    %v66 = vpop.xlane.xlu0 %65
    %67 = vadd.xlane.f32.xlu0 %v46
    %v68 = vpop.xlane.xlu0 %67
    %69 = vadd.xlane.f32.xlu0 %v47
    %v70 = vpop.xlane.xlu0 %69
    %71 = vadd.xlane.f32.xlu0 %v48
    %v72 = vpop.xlane.xlu0 %71
    %73 = vadd.xlane.f32.xlu0 %v49
    %v74 = vpop.xlane.xlu0 %73
    %75 = vadd.xlane.f32.xlu0 %v50
    %v76 = vpop.xlane.xlu0 %75
    %77 = vadd.xlane.f32.xlu0 %v51
    %v78 = vpop.xlane.xlu0 %77
    %79 = vadd.xlane.f32.xlu0 %v52
    %v80 = vpop.xlane.xlu0 %79
    %81 = vadd.xlane.f32.xlu0 %v53
    %v82 = vpop.xlane.xlu0 %81
    %83 = vadd.xlane.f32.xlu0 %v54
    %v84 = vpop.xlane.xlu0 %83
    %85 = vadd.xlane.f32.xlu0 %v55
    %v86 = vpop.xlane.xlu0 %85
    %87 = vadd.xlane.f32.xlu0 %v56
    %v88 = vpop.xlane.xlu0 %87
    %v89 = vmax.f32 %v58, 1e-16
    %v90 = vmax.f32 %v60, 1e-16
    %v91 = vmax.f32 %v62, 1e-16
    %v92 = vmax.f32 %v64, 1e-16
    %v93 = vmax.f32 %v66, 1e-16
    %v94 = vmax.f32 %v68, 1e-16
    %v95 = vmax.f32 %v70, 1e-16
    %v96 = vmax.f32 %v72, 1e-16
    %v97 = vmax.f32 %v74, 1e-16
    %v98 = vmax.f32 %v76, 1e-16
    %v99 = vmax.f32 %v78, 1e-16
    %v100 = vmax.f32 %v80, 1e-16
    %v101 = vmax.f32 %v82, 1e-16
    %v102 = vmax.f32 %v84, 1e-16
    %v103 = vmax.f32 %v86, 1e-16
    %v104 = vmax.f32 %v88, 1e-16
    %v105 = vrsqrt.pop %v89
    %v106 = vmul.f32 %v105, %v89
    %v107 = vmul.f32 %v106, %v105
    %v108 = vmul.f32 0.5, %v107
    %v109 = vsub.f32 1.5, %v108
    %v110 = vmul.f32 %v105, %v109
    %vm111 = vweird.f32 %v89
    %vm112 = vweird.f32 %v105
    %vm113 = vmor %vm111, %vm112
    %v114 = vsel %vm113, %v105, %v110
    %v115 = vrsqrt.pop %v90
    %v116 = vmul.f32 %v115, %v90
    %v117 = vmul.f32 %v116, %v115
    %v118 = vmul.f32 0.5, %v117
    %v119 = vsub.f32 1.5, %v118
    %v120 = vmul.f32 %v115, %v119
    %vm121 = vweird.f32 %v90
    %vm122 = vweird.f32 %v115
    %vm123 = vmor %vm121, %vm122
    %v124 = vsel %vm123, %v115, %v120
    %v125 = vrsqrt.pop %v91
    %v126 = vmul.f32 %v125, %v91
    %v127 = vmul.f32 %v126, %v125
    %v128 = vmul.f32 0.5, %v127
    %v129 = vsub.f32 1.5, %v128
    %v130 = vmul.f32 %v125, %v129
    %vm131 = vweird.f32 %v91
    %vm132 = vweird.f32 %v125
    %vm133 = vmor %vm131, %vm132
    %v134 = vsel %vm133, %v125, %v130
    %v135 = vrsqrt.pop %v92
    %v136 = vmul.f32 %v135, %v92
    %v137 = vmul.f32 %v136, %v135
    %v138 = vmul.f32 0.5, %v137
    %v139 = vsub.f32 1.5, %v138
    %v140 = vmul.f32 %v135, %v139
    %vm141 = vweird.f32 %v92
    %vm142 = vweird.f32 %v135
    %vm143 = vmor %vm141, %vm142
    %v144 = vsel %vm143, %v135, %v140
    %v145 = vrsqrt.pop %v93
    %v146 = vmul.f32 %v145, %v93
    %v147 = vmul.f32 %v146, %v145
    %v148 = vmul.f32 0.5, %v147
    %v149 = vsub.f32 1.5, %v148
    %v150 = vmul.f32 %v145, %v149
    %vm151 = vweird.f32 %v93
    %vm152 = vweird.f32 %v145
    %vm153 = vmor %vm151, %vm152
    %v154 = vsel %vm153, %v145, %v150
    %v155 = vrsqrt.pop %v94
    %v156 = vmul.f32 %v155, %v94
    %v157 = vmul.f32 %v156, %v155
    %v158 = vmul.f32 0.5, %v157
    %v159 = vsub.f32 1.5, %v158
    %v160 = vmul.f32 %v155, %v159
    %vm161 = vweird.f32 %v94
    %vm162 = vweird.f32 %v155
    %vm163 = vmor %vm161, %vm162
    %v164 = vsel %vm163, %v155, %v160
    %v165 = vrsqrt.pop %v95
    %v166 = vmul.f32 %v165, %v95
    %v167 = vmul.f32 %v166, %v165
    %v168 = vmul.f32 0.5, %v167
    %v169 = vsub.f32 1.5, %v168
    %v170 = vmul.f32 %v165, %v169
    %vm171 = vweird.f32 %v95
    %vm172 = vweird.f32 %v165
    %vm173 = vmor %vm171, %vm172
    %v174 = vsel %vm173, %v165, %v170
    %v175 = vrsqrt.pop %v96
    %v176 = vmul.f32 %v175, %v96
    %v177 = vmul.f32 %v176, %v175
    %v178 = vmul.f32 0.5, %v177
    %v179 = vsub.f32 1.5, %v178
    %v180 = vmul.f32 %v175, %v179
    %vm181 = vweird.f32 %v96
    %vm182 = vweird.f32 %v175
    %vm183 = vmor %vm181, %vm182
    %v184 = vsel %vm183, %v175, %v180
    %v185 = vrsqrt.pop %v97
    %v186 = vmul.f32 %v185, %v97
    %v187 = vmul.f32 %v186, %v185
    %v188 = vmul.f32 0.5, %v187
    %v189 = vsub.f32 1.5, %v188
    %v190 = vmul.f32 %v185, %v189
    %vm191 = vweird.f32 %v97
    %vm192 = vweird.f32 %v185
    %vm193 = vmor %vm191, %vm192
    %v194 = vsel %vm193, %v185, %v190
    %v195 = vrsqrt.pop %v98
    %v196 = vmul.f32 %v195, %v98
    %v197 = vmul.f32 %v196, %v195
    %v198 = vmul.f32 0.5, %v197
    %v199 = vsub.f32 1.5, %v198
    %v200 = vmul.f32 %v195, %v199
    %vm201 = vweird.f32 %v98
    %vm202 = vweird.f32 %v195
    %vm203 = vmor %vm201, %vm202
    %v204 = vsel %vm203, %v195, %v200
    %v205 = vrsqrt.pop %v99
    %v206 = vmul.f32 %v205, %v99
    %v207 = vmul.f32 %v206, %v205
    %v208 = vmul.f32 0.5, %v207
    %v209 = vsub.f32 1.5, %v208
    %v210 = vmul.f32 %v205, %v209
    %vm211 = vweird.f32 %v99
    %vm212 = vweird.f32 %v205
    %vm213 = vmor %vm211, %vm212
    %v214 = vsel %vm213, %v205, %v210
    %v215 = vrsqrt.pop %v100
    %v216 = vmul.f32 %v215, %v100
    %v217 = vmul.f32 %v216, %v215
    %v218 = vmul.f32 0.5, %v217
    %v219 = vsub.f32 1.5, %v218
    %v220 = vmul.f32 %v215, %v219
    %vm221 = vweird.f32 %v100
    %vm222 = vweird.f32 %v215
    %vm223 = vmor %vm221, %vm222
    %v224 = vsel %vm223, %v215, %v220
    %v225 = vrsqrt.pop %v101
    %v226 = vmul.f32 %v225, %v101
    %v227 = vmul.f32 %v226, %v225
    %v228 = vmul.f32 0.5, %v227
    %v229 = vsub.f32 1.5, %v228
    %v230 = vmul.f32 %v225, %v229
    %vm231 = vweird.f32 %v101
    %vm232 = vweird.f32 %v225
    %vm233 = vmor %vm231, %vm232
    %v234 = vsel %vm233, %v225, %v230
    %v235 = vrsqrt.pop %v102
    %v236 = vmul.f32 %v235, %v102
    %v237 = vmul.f32 %v236, %v235
    %v238 = vmul.f32 0.5, %v237
    %v239 = vsub.f32 1.5, %v238
    %v240 = vmul.f32 %v235, %v239
    %vm241 = vweird.f32 %v102
    %vm242 = vweird.f32 %v235
    %vm243 = vmor %vm241, %vm242
    %v244 = vsel %vm243, %v235, %v240
    %v245 = vrsqrt.pop %v103
    %v246 = vmul.f32 %v245, %v103
    %v247 = vmul.f32 %v246, %v245
    %v248 = vmul.f32 0.5, %v247
    %v249 = vsub.f32 1.5, %v248
    %v250 = vmul.f32 %v245, %v249
    %vm251 = vweird.f32 %v103
    %vm252 = vweird.f32 %v245
    %vm253 = vmor %vm251, %vm252
    %v254 = vsel %vm253, %v245, %v250
    %v255 = vrsqrt.pop %v104
    %v256 = vmul.f32 %v255, %v104
    %v257 = vmul.f32 %v256, %v255
    %v258 = vmul.f32 0.5, %v257
    %v259 = vsub.f32 1.5, %v258
    %v260 = vmul.f32 %v255, %v259
    %vm261 = vweird.f32 %v104
    %vm262 = vweird.f32 %v255
    %vm263 = vmor %vm261, %vm262
    %v264 = vsel %vm263, %v255, %v260
    %v265 = vmul.f32 %v25, %v114
    %v266 = vmul.f32 %v26, %v124
    %v267 = vmul.f32 %v27, %v134
    %v268 = vmul.f32 %v28, %v144
    %v269 = vmul.f32 %v29, %v154
    %v270 = vmul.f32 %v30, %v164
    %v271 = vmul.f32 %v31, %v174
    %v272 = vmul.f32 %v32, %v184
    %v273 = vmul.f32 %v33, %v194
    %v274 = vmul.f32 %v34, %v204
    %v275 = vmul.f32 %v35, %v214
    %v276 = vmul.f32 %v36, %v224
    %v277 = vmul.f32 %v37, %v234
    %v278 = vmul.f32 %v38, %v244
    %v279 = vmul.f32 %v39, %v254
    %v280 = vmul.f32 %v40, %v264
    %281 = vst [vmem:[#allocation5] sm:$0xff] %v265
    %282 = vst [vmem:[#allocation5 + $0x8] sm:$0xff] %v266
    %283 = vst [vmem:[#allocation5 + $0x10] sm:$0xff] %v267
    %284 = vst [vmem:[#allocation5 + $0x18] sm:$0xff] %v268
    %285 = vst [vmem:[#allocation5 + $0x20] sm:$0xff] %v269
    %286 = vst [vmem:[#allocation5 + $0x28] sm:$0xff] %v270
    %287 = vst [vmem:[#allocation5 + $0x30] sm:$0xff] %v271
    %288 = vst [vmem:[#allocation5 + $0x38] sm:$0xff] %v272
    %289 = vst [vmem:[#allocation5 + $0x40] sm:$0xff] %v273
    %290 = vst [vmem:[#allocation5 + $0x48] sm:$0xff] %v274
    %291 = vst [vmem:[#allocation5 + $0x50] sm:$0xff] %v275
    %292 = vst [vmem:[#allocation5 + $0x58] sm:$0xff] %v276
    %293 = vst [vmem:[#allocation5 + $0x60] sm:$0xff] %v277
    %294 = vst [vmem:[#allocation5 + $0x68] sm:$0xff] %v278
    %295 = vst [vmem:[#allocation5 + $0x70] sm:$0xff] %v279
    %296 = vst [vmem:[#allocation5 + $0x78] sm:$0xff] %v280
    // Predicated region
    $region10: #{tpu_custom_call.1} parent=1 // pred_check
      _
    $region11: #{tpu_custom_call.1} parent=1 // pred_check_branch
      %298 = sbr.rel (0) target = $region13
    $region12: #{tpu_custom_call.1} parent=1 // pred_region
      %300 = vsyncadd [#allocation4], 0
      %s301 = sshll.u32 [#allocation5], 4
      %s302 = int_to_ptr.vmem [resolvable:$true] %s301
      %s303 = sshll.u32 %s1, 4
      %s304 = int_to_ptr.hbm [resolvable:$true] %s303
      %309 = dma.vmem_to_hbm [thread:$0]  %s302, 2048, %s304, [#allocation4], 128, 128, 8
    $region13: #{tpu_custom_call.1} parent=1 // pred_fallthru
      _
    // Predicated region
    $region14: #{tpu_custom_call.1} parent=1 // pred_check
      _
    $region15: #{tpu_custom_call.1} parent=1 // pred_check_branch
      %311 = sbr.rel (0) target = $region17
    $region16: #{tpu_custom_call.1} parent=1 // pred_region
      %313 = dma.done [#allocation4], 2048
    $region17: #{tpu_custom_call.1} parent=1 // pred_fallthru
      _
    %314 = vsyncpa [#allocation3], 1
    %315 = vsyncpa [#allocation4], 1

</llo_original>
